<compile_context>
chip_gen: v7x
topology: tpu7x:2x2x1
jax: 0.10.0
libtpu: 0.0.40
codegen_flags: <defaults>
</compile_context>

<pallas_src>
import jax
import jax.numpy as jnp
from jax.experimental import pallas as pl
from jax.experimental.pallas import tpu as pltpu

_LANES = 128
_TARGET_BLOCK_BYTES = 2 * 1024 * 1024   # per input, per grid step (f32: 4096 rows)
_MIN_PALLAS_ELEMS = 1024                 # below this, launch overhead dominates


def _elementwise_losses(x, mode):
    if mode == "iou":
        return -jnp.log(x)
    # 'linear_iou' and 'giou' share the same elementwise form (1 - x).
    return 1.0 - x


def _losses_small(x, w, mode):
    """Pure-JAX path: tiny inputs and the sub-128-lane remainder."""
    losses = _elementwise_losses(x.astype(jnp.float32), mode)
    if w is not None:
        losses = losses * w.astype(jnp.float32)
    return jnp.sum(losses)


def _block_losses(x, w, mode):
    losses = _elementwise_losses(x.astype(jnp.float32), mode)
    if w is not None:
        losses = losses * w.astype(jnp.float32)
    return losses


def _make_kernel(mode, block_rows, last_valid_rows, mask_last, weighted):
    """Per-grid-step lane-partial-sum kernel. Masking only in the last block."""

    def kernel(*refs):
        if weighted:
            x_ref, w_ref, o_ref = refs
        else:
            x_ref, o_ref = refs

        def losses_of_block():
            x = x_ref[...]
            w = w_ref[...] if weighted else None
            return _block_losses(x, w, mode)

        def emit(losses):
            o_ref[...] = jnp.sum(losses, axis=0, keepdims=True).reshape(1, 1, _LANES)

        if not mask_last:
            # Every block is full: pure streaming path, no iota / no select.
            emit(losses_of_block())
        else:
            i = pl.program_id(0)
            last = pl.num_programs(0) - 1

            @pl.when(i != last)
            def _():
                emit(losses_of_block())

            @pl.when(i == last)
            def _():
                # Only the final partial block pays for the mask.  Selecting on
                # the finished losses also scrubs NaN/Inf coming from garbage
                # rows of the partial DMA (e.g. -log of stale VMEM bits).
                row = jax.lax.broadcasted_iota(jnp.int32, (block_rows, _LANES), 0)
                emit(jnp.where(row < last_valid_rows, losses_of_block(), 0.0))

    return kernel


def _as_flat(v):
    v = jnp.asarray(v).reshape(-1)
    if v.dtype not in (jnp.float32, jnp.bfloat16):
        v = v.astype(jnp.float32)
    return v


def iou_loss(ious, gious=None, weight=None, loc_loss_type="iou"):
    """JAX/Pallas equivalent of IOULoss.forward. Returns a scalar fp32."""
    if loc_loss_type in ("iou", "linear_iou"):
        x = ious
    elif loc_loss_type == "giou":
        assert gious is not None
        x = gious
    else:
        raise NotImplementedError(loc_loss_type)

    x = _as_flat(x)
    w = _as_flat(weight) if weight is not None else None

    n = x.shape[0]
    if n == 0:
        return jnp.zeros((), jnp.float32)
    if n < _MIN_PALLAS_ELEMS:
        return _losses_small(x, w, loc_loss_type)

    rows = n // _LANES
    rem = n - rows * _LANES

    # Sub-128-lane remainder: handled in plain JAX instead of padding (and
    # rewriting) the whole array.  The N % 128 == 0 case is fully zero-copy.
    # TODO(synk): a fully zero-copy unaligned path needs a flat element-masked
    # 1-D kernel / manual DMA; the prefix slice below still costs one copy when
    # rem != 0.
    tail = None
    if rem:
        tail = _losses_small(x[rows * _LANES:],
                             w[rows * _LANES:] if w is not None else None,
                             loc_loss_type)
        x = x[: rows * _LANES]
        if w is not None:
            w = w[: rows * _LANES]

    x2 = x.reshape(rows, _LANES)
    w2 = w.reshape(rows, _LANES) if w is not None else None

    # Dtype-aware block size: keep per-step DMA bytes ~constant (~2 MiB/input),
    # i.e. 4096 rows for f32 and 8192 rows for bf16.  Weighted f32 is then
    # 2 inputs x 2 buffers x 2 MiB = 8 MiB double-buffered VMEM, inside the
    # default scoped-VMEM limit on every generation (v5e: 16 MiB).
    itemsize = x2.dtype.itemsize
    if w2 is not None:
        itemsize = max(itemsize, w2.dtype.itemsize)
    max_rows = max(8, _TARGET_BLOCK_BYTES // (_LANES * itemsize))
    block_rows = rows if rows <= max_rows else max_rows
    num_blocks = pl.cdiv(rows, block_rows)
    last_valid_rows = rows - (num_blocks - 1) * block_rows
    mask_last = last_valid_rows != block_rows

    weighted = w2 is not None
    kernel = _make_kernel(loc_loss_type, block_rows, last_valid_rows,
                          mask_last, weighted)

    in_specs = [pl.BlockSpec((block_rows, _LANES), lambda i: (i, 0))]
    args = [x2]
    if weighted:
        in_specs.append(pl.BlockSpec((block_rows, _LANES), lambda i: (i, 0)))
        args.append(w2)

    # TODO(synk): on v7x, use pltpu.CORE_PARALLEL (or pl.core_map over a
    # tensorcore mesh) to truly shard the grid over both TensorCores; plain
    # "parallel" barely changes codegen but is harmless on v5e/v6e.
    # TODO(synk): for steady-state training, bucket N and pass the valid row
    # count via scalar prefetch to avoid a recompile per distinct shape.
    partial_sums = pl.pallas_call(
        kernel,
        out_shape=jax.ShapeDtypeStruct((num_blocks, 1, _LANES), jnp.float32),
        grid_spec=pltpu.PrefetchScalarGridSpec(
            num_scalar_prefetch=0,
            grid=(num_blocks,),
            in_specs=in_specs,
            out_specs=pl.BlockSpec((1, 1, _LANES), lambda i: (i, 0, 0)),
        ),
        compiler_params=pltpu.CompilerParams(
            dimension_semantics=("parallel",)),
    )(*args)

    # Tiny final reduction (num_blocks * 128 values) in plain JAX.
    total = jnp.sum(partial_sums)
    if tail is not None:
        total = total + tail
    return total


def _reference(ious, gious, weight, mode):
    if mode == "iou":
        losses = -jnp.log(ious.astype(jnp.float32))
    elif mode == "linear_iou":
        losses = 1.0 - ious.astype(jnp.float32)
    else:
        losses = 1.0 - gious.astype(jnp.float32)
    if weight is not None:
        losses = losses * weight.astype(jnp.float32)
    return jnp.sum(losses)


if __name__ == "__main__":
    key = jax.random.PRNGKey(0)
    ok = True

    def make_inputs(n_boxes, k, dtype=jnp.float32):
        k1, k2, k3 = jax.random.split(k, 3)
        ious_ = jax.random.uniform(k1, (n_boxes,), jnp.float32, minval=0.1, maxval=1.0)
        gious_ = jax.random.uniform(k2, (n_boxes,), jnp.float32, minval=-0.5, maxval=1.0)
        weight_ = jax.random.uniform(k3, (n_boxes,), jnp.float32, minval=0.0, maxval=2.0)
        return ious_.astype(dtype), gious_.astype(dtype), weight_.astype(dtype)

    k_main, k_big, k_bf16 = jax.random.split(key, 3)

    # Main check: Pallas path (N >= 1024), N % 128 != 0 so the pure-JAX tail
    # path is exercised; all three modes, with and without weight.
    N = 3000
    ious, gious, weight = make_inputs(N, k_main)
    for mode in ("iou", "linear_iou", "giou"):
        for w in (None, weight):
            got = jax.block_until_ready(
                iou_loss(ious, gious=gious, weight=w, loc_loss_type=mode))
            ref = _reference(ious, gious, w, mode)
            if not jnp.allclose(got, ref, rtol=1e-4, atol=1e-2):
                ok = False
                print(f"MISMATCH N={N} mode={mode} "
                      f"weight={'yes' if w is not None else 'no'}: {got} vs {ref}")

    # Multi-block check: several 4096-row blocks, a partial (masked) last grid
    # block, plus a sub-128 remainder handled in JAX.
    N_big = 2 * 4096 * _LANES + 5000
    ious_b, gious_b, weight_b = make_inputs(N_big, k_big)
    for mode, w in (("giou", weight_b), ("iou", None)):
        got = jax.block_until_ready(
            iou_loss(ious_b, gious=gious_b, weight=w, loc_loss_type=mode))
        ref = _reference(ious_b, gious_b, w, mode)
        if not jnp.allclose(got, ref, rtol=1e-4, atol=1.0):
            ok = False
            print(f"MISMATCH N={N_big} mode={mode} "
                  f"weight={'yes' if w is not None else 'no'}: {got} vs {ref}")

    # bf16 inputs: kept bf16 in HBM, upcast in-kernel (dtype-aware block rows).
    ious_h, gious_h, weight_h = make_inputs(N, k_bf16, dtype=jnp.bfloat16)
    got = jax.block_until_ready(
        iou_loss(ious_h, gious=gious_h, weight=weight_h, loc_loss_type="linear_iou"))
    ref = _reference(ious_h, gious_h, weight_h, "linear_iou")
    if not jnp.allclose(got, ref, rtol=1e-3, atol=1e-1):
        ok = False
        print(f"MISMATCH bf16 N={N}: {got} vs {ref}")

    # Small-N fast path and empty-input edge case.
    got = iou_loss(ious[:8], weight=weight[:8], loc_loss_type="linear_iou")
    ref = _reference(ious[:8], None, weight[:8], "linear_iou")
    if not jnp.allclose(got, ref, rtol=1e-5, atol=1e-5):
        ok = False
        print(f"MISMATCH small-N fast path: {got} vs {ref}")
    empty = iou_loss(jnp.zeros((0,), jnp.float32), loc_loss_type="linear_iou")
    if not jnp.allclose(empty, 0.0):
        ok = False
        print(f"MISMATCH empty input: {empty} vs 0.0")

    if ok:
        print("KERNEL_OK")
</pallas_src>

<mosaic_0001>
module attributes {stable_mosaic.version = 11 : i64} {
  func.func @kernel(%arg0: i32, %arg1: memref<23x128xf32, #tpu.memory_space<vmem>>, %arg2: memref<1x1x128xf32, #tpu.memory_space<vmem>>) attributes {dimension_semantics = [#tpu.dimension_semantics<parallel>], iteration_bounds = array<i64: 1>, scalar_prefetch = 0 : i64, scratch_operands = 0 : i64, tpu.core_type = #tpu.core_type<tc>, window_params = [{transform_indices = @transform_0, window_bounds = array<i64: 23, 128>}, {transform_indices = @transform_1, window_bounds = array<i64: 1, 1, 128>}]} {
    %c0 = arith.constant 0 : index
    %c0_0 = arith.constant 0 : index
    %0 = vector.load %arg1[%c0, %c0_0] : memref<23x128xf32, #tpu.memory_space<vmem>>, vector<23x128xf32>
    %1 = math.log %0 : vector<23x128xf32>
    %cst = arith.constant 0.000000e+00 : f32
    %2 = vector.broadcast %cst : f32 to vector<23x128xf32>
    %3 = arith.subf %2, %1 : vector<23x128xf32>
    %cst_1 = arith.constant dense<0.000000e+00> : vector<128xf32>
    %4 = vector.multi_reduction <add>, %3, %cst_1 [0] : vector<23x128xf32> to vector<128xf32>
    %5 = vector.shape_cast %4 : vector<128xf32> to vector<1x128xf32>
    %6 = vector.shape_cast %5 : vector<1x128xf32> to vector<1x1x128xf32>
    %c0_2 = arith.constant 0 : index
    %c0_3 = arith.constant 0 : index
    %c0_4 = arith.constant 0 : index
    %7 = vector.load %arg2[%c0_2, %c0_3, %c0_4] : memref<1x1x128xf32, #tpu.memory_space<vmem>>, vector<1x1x128xf32>
    tpu.vector_store %arg2[%c0_2, %c0_3, %c0_4], %6 {strides = array<i32>} : memref<1x1x128xf32, #tpu.memory_space<vmem>>, vector<1x1x128xf32>,
    return
  }
  func.func @transform_0(%arg0: i32) -> (i32, i32) {
    %c0_i32 = arith.constant 0 : i32
    %c0_i32_0 = arith.constant 0 : i32
    return %arg0, %c0_i32 : i32, i32
  }
  func.func @transform_1(%arg0: i32) -> (i32, i32, i32) {
    %c0_i32 = arith.constant 0 : i32
    %c0_i32_0 = arith.constant 0 : i32
    %c0_i32_1 = arith.constant 0 : i32
    return %arg0, %c0_i32, %c0_i32_0 : i32, i32, i32
  }
}

</mosaic_0001>

<llo_original>
// kernel: tpu_custom_call.1
$region0: #{tpu_custom_call.1}
  #allocation0 [shape = 'u32[]', space=smem, size = 0x4, offset = 0x4, fixed_abs, tag = 'smem constant byte address 0x4 - core index']
  #allocation1 [shape = 'u32[144,128]{1,0:T(1,128)}', space=vmem, size = 0x12000, scoped, tag = 'internal scratch']
  %s0 = inlined_call_operand.hbm [shape: f32[23,128], index: 0, kind: input, shape index: {}]
  %s1 = inlined_call_operand.hbm [shape: f32[1,1,128], index: 1, kind: output, shape index: {}]
  %s2 = sld [smem:[#allocation0]]
  $region18: #{tpu_custom_call.1} parent=0
    _
  %s4 = ssub.s32 1, %s2
  %s5 = scalar_select 0, %s4, %s2
  $region1: #{tpu_custom_call.1} parent=0
    #allocation2 [shape = 'u8[12288]{0}', space=vmem, size = 0x3000, scoped, tag = 'input window, operand 0, single buffered']
    #allocation3 [shape = 's32[1]{0}', space=sflag, size = 0x4, scoped, tag = 'scoped memory for tpu_custom_call.1']
    #allocation4 [shape = 's32[1]{0}', space=sflag, size = 0x4, scoped, tag = 'scoped memory for tpu_custom_call.1']
    #allocation5 [shape = 'u8[512]{0}', space=vmem, size = 0x400, scoped, tag = 'output window, operand 0, single buffered']
    %6 = vsyncpa [#allocation3], 0
    %7 = vsyncpa [#allocation4], 0
    // Predicated region
    $region2: #{tpu_custom_call.1} parent=1 // pred_check
      _
    $region3: #{tpu_custom_call.1} parent=1 // pred_check_branch
      %9 = sbr.rel (0) target = $region5
    $region4: #{tpu_custom_call.1} parent=1 // pred_region
      %s11 = ssub.s32 384, 384
      %12 = vsyncadd [#allocation3], %s11
      %s13 = sshll.u32 [#allocation2], 4
      %s14 = int_to_ptr.vmem [resolvable:$true] %s13
      %19 = dma.hbm_to_vmem [thread:$0]  %s0, 384, %s14, [#allocation3], 128, 128, 8
    $region5: #{tpu_custom_call.1} parent=1 // pred_fallthru
      _
    // Predicated region
    $region6: #{tpu_custom_call.1} parent=1 // pred_check
      _
    $region7: #{tpu_custom_call.1} parent=1 // pred_check_branch
      %21 = sbr.rel (0) target = $region9
    $region8: #{tpu_custom_call.1} parent=1 // pred_region
      %22 = dma.done [#allocation3], 384
    $region9: #{tpu_custom_call.1} parent=1 // pred_fallthru
      _
    %v23 = vld [vmem:[#allocation2] sm:$0xff]
    %v24 = vld [vmem:[#allocation2 + $0x8] sm:$0xff]
    %v25 = vld [vmem:[#allocation2 + $0x10] sm:$0x7f]
    %v26 = vlog2.pop %v23
    %v27 = vmul.f32 %v26, 0.6931472
    %v28 = vlog2.pop %v24
    %v29 = vmul.f32 %v28, 0.6931472
    %v30 = vlog2.pop %v25
    %v31 = vmul.f32 %v30, 0.6931472
    %v32 = vsub.f32 0.0, %v27
    %v33 = vsub.f32 0.0, %v29
    %v34 = vsub.f32 0.0, %v31
    %v35 = vadd.f32 %v32, %v33
    %vm36 = vcmask 1046528
    %v37 = vsel %vm36, %v34, 0.0
    %v38 = vadd.f32 %v35, %v37
    %v39 = vrot.slane %v38, 4
    %v40 = vadd.f32 %v38, %v39
    %v41 = vrot.slane %v40, 2
    %v42 = vadd.f32 %v40, %v41
    %v43 = vrot.slane %v42, 1
    %v44 = vadd.f32 %v42, %v43
    %45 = vst [vmem:[#allocation5] sm:$0x1] %v44
    // Predicated region
    $region10: #{tpu_custom_call.1} parent=1 // pred_check
      _
    $region11: #{tpu_custom_call.1} parent=1 // pred_check_branch
      %47 = sbr.rel (0) target = $region13
    $region12: #{tpu_custom_call.1} parent=1 // pred_region
      %s49 = ssub.s32 16, 16
      %50 = vsyncadd [#allocation4], %s49
      %s52 = sshll.u32 [#allocation5], 4
      %s53 = int_to_ptr.vmem [resolvable:$true] %s52
      %55 = dma.vmem_to_hbm [thread:$0]  %s53, 16, %s1, [#allocation4]
    $region13: #{tpu_custom_call.1} parent=1 // pred_fallthru
      _
    // Predicated region
    $region14: #{tpu_custom_call.1} parent=1 // pred_check
      _
    $region15: #{tpu_custom_call.1} parent=1 // pred_check_branch
      %57 = sbr.rel (0) target = $region17
    $region16: #{tpu_custom_call.1} parent=1 // pred_region
      %58 = dma.done [#allocation4], 16
    $region17: #{tpu_custom_call.1} parent=1 // pred_fallthru
      _
    %59 = vsyncpa [#allocation3], 1
    %60 = vsyncpa [#allocation4], 1

</llo_original>
